<compile_context>
chip_gen: v6e
topology: v6e:2x2x1
jax: 0.10.0
libtpu: 0.0.40
codegen_flags: <defaults>
</compile_context>

<pallas_src>
import functools
import math

import jax
import jax.numpy as jnp
from jax.experimental import pallas as pl
from jax.experimental.pallas import tpu as pltpu


def _round_up(x, m):
    return (x + m - 1) // m * m


def _pick_tile(dim, candidates):
    for t in candidates:
        if dim % t == 0:
            return t
    return dim


def _proj_kernel(x_ref, w_ref, xw_ref):
    """XW[r, i-tile] = X[i-tile] @ W[r], cast to the aggregation compute dtype."""
    xw_ref[0] = jnp.dot(
        x_ref[...], w_ref[0], preferred_element_type=jnp.float32
    ).astype(xw_ref.dtype)


def _agg_kernel(adj_ref, xw_ref, invdeg_ref, bias_ref, out_ref, *, use_relu):
    """out[i-tile] += inv_deg_r * (A_r[i-tile, k-tile] @ XW_r[k-tile]); bias +
    activation applied on the last (relation, src) grid step."""
    r = pl.program_id(1)
    k = pl.program_id(2)

    @pl.when(jnp.logical_and(r == 0, k == 0))
    def _init():
        out_ref[...] = jnp.zeros_like(out_ref)

    contrib = jnp.dot(adj_ref[0], xw_ref[0], preferred_element_type=jnp.float32)
    out_ref[...] += invdeg_ref[0] * contrib  # (TM, 1) f32 row scale, exact

    @pl.when(jnp.logical_and(r == pl.num_programs(1) - 1,
                             k == pl.num_programs(2) - 1))
    def _finalize():
        h = out_ref[...] + bias_ref[...]
        if use_relu:
            h = jnp.maximum(h, 0.0)
        out_ref[...] = h
        # TODO(synk): dropout with p>0 (training mode) would need pltpu.prng_*; p=0.0 here.
        # TODO(synk): self_loop=False / use_basis=False (module defaults) are omitted.


@functools.partial(jax.jit, static_argnames=("use_relu", "compute_dtype"))
def rel_graph_conv_layer(adj, x, weight, bias, *, use_relu=True,
                         compute_dtype=jnp.bfloat16):
    """adj: (R, N, N) f32 (row = dst node), x: (N, IN) f32,
    weight: (R, IN, OUT) f32, bias: (OUT,) f32  ->  (N, OUT) f32."""
    R, N, _ = adj.shape
    IN = x.shape[1]
    OUT = weight.shape[2]

    # Lane-dense padding (multiples of 128 on the tiled / output axes).
    N_pad = _round_up(N, 128)
    OUT_pad = _round_up(OUT, 128)
    TM = _pick_tile(N_pad, (256, 128))        # dst-row tile (MXU friendly)
    TK = _pick_tile(N_pad, (512, 256, 128))   # src-col (contraction) tile
    pad_n, pad_o = N_pad - N, OUT_pad - OUT

    # Wrapper-side prep (trivial vs. the O(R*N^2*OUT) aggregation):
    #  - full-row in-degree (must NOT be computed per src tile once K is tiled)
    #  - zero padding + compute-dtype cast (binary adjacency is exact in bf16)
    inv_deg = 1.0 / jnp.maximum(jnp.sum(adj, axis=-1, keepdims=True), 1.0)
    adj_p = jnp.pad(adj, ((0, 0), (0, pad_n), (0, pad_n))).astype(compute_dtype)
    x_p = jnp.pad(x.astype(jnp.float32), ((0, pad_n), (0, 0)))
    w_p = jnp.pad(weight.astype(jnp.float32), ((0, 0), (0, 0), (0, pad_o)))
    invdeg_p = jnp.pad(inv_deg.astype(jnp.float32), ((0, 0), (0, pad_n), (0, 0)))
    bias_p = jnp.pad(bias.astype(jnp.float32), (0, pad_o)).reshape(1, OUT_pad)

    # Kernel 1: per-relation projection XW_r = X @ W_r  ->  (R, N_pad, OUT_pad).
    xw = pl.pallas_call(
        _proj_kernel,
        out_shape=jax.ShapeDtypeStruct((R, N_pad, OUT_pad), compute_dtype),
        grid_spec=pltpu.PrefetchScalarGridSpec(
            num_scalar_prefetch=0,
            grid=(R, N_pad // TM),
            in_specs=[
                pl.BlockSpec((TM, IN), lambda r, i: (i, 0)),
                pl.BlockSpec((1, IN, OUT_pad), lambda r, i: (r, 0, 0)),
            ],
            out_specs=pl.BlockSpec((1, TM, OUT_pad), lambda r, i: (r, i, 0)),
        ),
        compiler_params=pltpu.CompilerParams(
            dimension_semantics=("parallel", "parallel"),
        ),
    )(x_p, w_p)

    # Kernel 2: tiled aggregation over (dst tiles, relations, src tiles).
    item = jnp.dtype(compute_dtype).itemsize
    cost = pl.CostEstimate(
        flops=2 * R * N_pad * N_pad * OUT_pad,
        transcendentals=0,
        bytes_accessed=(R * N_pad * N_pad * item                       # adjacency stream
                        + (N_pad // TM) * R * N_pad * OUT_pad * item   # XW re-read per dst tile
                        + N_pad * OUT_pad * 4),                        # output writeback
    )
    out_pad = pl.pallas_call(
        functools.partial(_agg_kernel, use_relu=use_relu),
        out_shape=jax.ShapeDtypeStruct((N_pad, OUT_pad), jnp.float32),
        grid_spec=pltpu.PrefetchScalarGridSpec(
            num_scalar_prefetch=0,
            grid=(N_pad // TM, R, N_pad // TK),
            in_specs=[
                pl.BlockSpec((1, TM, TK), lambda i, r, k: (r, i, k)),       # A_r tile
                pl.BlockSpec((1, TK, OUT_pad), lambda i, r, k: (r, k, 0)),  # XW_r tile
                pl.BlockSpec((1, TM, 1), lambda i, r, k: (r, i, 0)),        # inv_deg rows
                pl.BlockSpec((1, OUT_pad), lambda i, r, k: (0, 0)),         # bias
            ],
            out_specs=pl.BlockSpec((TM, OUT_pad), lambda i, r, k: (i, 0)),
        ),
        compiler_params=pltpu.CompilerParams(
            dimension_semantics=("parallel", "arbitrary", "arbitrary"),
            vmem_limit_bytes=32 * 1024 * 1024,
        ),
        cost_estimate=cost,
    )(adj_p, xw, invdeg_p, bias_p)
    # TODO(synk): for very sparse graphs a scalar-prefetch nonzero-block mask could
    # skip all-zero adjacency tiles (data-dependent index_map); dense demo omits it.

    return out_pad[:N, :OUT]


def _reference(adj, x, weight, bias, use_relu=True):
    deg = jnp.maximum(jnp.sum(adj, axis=-1, keepdims=True), 1.0)          # (R, N, 1)
    msg = jnp.einsum("rds,sf->rdf", adj, x) / deg                         # (R, N, IN)
    h = jnp.einsum("rdf,rfo->do", msg, weight) + bias[None, :]            # (N, OUT)
    return jnp.maximum(h, 0.0) if use_relu else h


if __name__ == "__main__":
    key = jax.random.PRNGKey(0)
    R, N, IN, OUT = 3, 16, 32, 32   # 3 relations, 16 nodes of a single node type

    k_adj, k_x, k_w = jax.random.split(key, 3)

    # deterministic synthetic graph: binary adjacency per relation (row = dst node)
    adj = (jax.random.uniform(k_adj, (R, N, N)) < 0.25).astype(jnp.float32)
    x = jax.random.normal(k_x, (N, IN), dtype=jnp.float32)

    # xavier_uniform_ with gain = calculate_gain('relu') = sqrt(2)
    bound = math.sqrt(2.0) * math.sqrt(6.0 / (IN + OUT))
    weight = jax.random.uniform(k_w, (R, IN, OUT), minval=-bound, maxval=bound,
                                dtype=jnp.float32)
    bias = jnp.zeros((OUT,), dtype=jnp.float32)  # nn.init.zeros_

    ref = _reference(adj, x, weight, bias, use_relu=True)

    # f32 compute path: matches the f32 reference tightly.
    out_f32 = jax.block_until_ready(
        rel_graph_conv_layer(adj, x, weight, bias, use_relu=True,
                             compute_dtype=jnp.float32))
    assert out_f32.shape == (N, OUT)
    assert jnp.allclose(out_f32, ref, atol=1e-4, rtol=1e-4), "f32 mismatch vs reference"

    # bf16 compute path (default / fast): binary adjacency is exact in bf16;
    # XW quantization gives ~1e-3 relative deviation.
    out_bf16 = jax.block_until_ready(
        rel_graph_conv_layer(adj, x, weight, bias, use_relu=True,
                             compute_dtype=jnp.bfloat16))
    assert out_bf16.shape == (N, OUT)
    assert jnp.allclose(out_bf16, ref, atol=3e-2, rtol=3e-2), "bf16 mismatch vs reference"

    print("KERNEL_OK")
</pallas_src>

<mosaic_0001>
module attributes {stable_mosaic.version = 11 : i64} {
  func.func @_agg_kernel(%arg0: i32, %arg1: i32, %arg2: i32, %arg3: memref<1x128x128xf32, #tpu.memory_space<vmem>>, %arg4: memref<1x128x128xf32, #tpu.memory_space<vmem>>, %arg5: memref<1x128x1xf32, #tpu.memory_space<vmem>>, %arg6: memref<1x128xf32, #tpu.memory_space<vmem>>, %arg7: memref<128x128xf32, #tpu.memory_space<vmem>>) attributes {dimension_semantics = [#tpu.dimension_semantics<parallel>, #tpu.dimension_semantics<arbitrary>, #tpu.dimension_semantics<arbitrary>], iteration_bounds = array<i64: 1, 3, 1>, scalar_prefetch = 0 : i64, scratch_operands = 0 : i64, tpu.core_type = #tpu.core_type<tc>, window_params = [{transform_indices = @transform_0, window_bounds = array<i64: 1, 128, 128>}, {transform_indices = @transform_1, window_bounds = array<i64: 1, 128, 128>}, {transform_indices = @transform_2, window_bounds = array<i64: 1, 128, 1>}, {pipeline_mode = #tpu.pipeline_mode<synchronous>, transform_indices = @transform_3, window_bounds = array<i64: 1, 128>}, {transform_indices = @transform_4, window_bounds = array<i64: 128, 128>}]} {
    %c0_i32 = arith.constant 0 : i32
    %0 = arith.cmpi eq, %arg1, %c0_i32 : i32
    %c0_i32_0 = arith.constant 0 : i32
    %1 = arith.cmpi eq, %arg2, %c0_i32_0 : i32
    %2 = arith.andi %0, %1 : i1
    %3 = arith.extui %2 : i1 to i32
    %c0_i32_1 = arith.constant 0 : i32
    %4 = arith.cmpi ne, %3, %c0_i32_1 : i32
    scf.if %4 {
      %cst_16 = arith.constant 0.000000e+00 : f32
      %22 = vector.broadcast %cst_16 : f32 to vector<128x128xf32>
      %c0_17 = arith.constant 0 : index
      %c0_18 = arith.constant 0 : index
      %23 = vector.load %arg7[%c0_17, %c0_18] : memref<128x128xf32, #tpu.memory_space<vmem>>, vector<128x128xf32>
      tpu.vector_store %arg7[%c0_17, %c0_18], %22 {strides = array<i32>} : memref<128x128xf32, #tpu.memory_space<vmem>>, vector<128x128xf32>,
    } else {
    }
    %c0 = arith.constant 0 : index
    %c0_2 = arith.constant 0 : index
    %c0_3 = arith.constant 0 : index
    %5 = vector.load %arg3[%c0, %c0_2, %c0_3] : memref<1x128x128xf32, #tpu.memory_space<vmem>>, vector<1x128x128xf32>
    %6 = vector.shape_cast %5 : vector<1x128x128xf32> to vector<128x128xf32>
    %c0_4 = arith.constant 0 : index
    %c0_5 = arith.constant 0 : index
    %c0_6 = arith.constant 0 : index
    %7 = vector.load %arg4[%c0_4, %c0_5, %c0_6] : memref<1x128x128xf32, #tpu.memory_space<vmem>>, vector<1x128x128xf32>
    %8 = vector.shape_cast %7 : vector<1x128x128xf32> to vector<128x128xf32>
    %cst = arith.constant dense<0.000000e+00> : vector<128x128xf32>
    %9 = tpu.matmul %6, %8, %cst {dimension_numbers = #tpu.dot_dimension_numbers<[1], [0], [0], [1], [0, 0, 1, 1], [], []>} : vector<128x128xf32>, vector<128x128xf32>, vector<128x128xf32> -> vector<128x128xf32>
    %c0_7 = arith.constant 0 : index
    %c0_8 = arith.constant 0 : index
    %10 = vector.load %arg7[%c0_7, %c0_8] : memref<128x128xf32, #tpu.memory_space<vmem>>, vector<128x128xf32>
    %c0_9 = arith.constant 0 : index
    %c0_10 = arith.constant 0 : index
    %c0_11 = arith.constant 0 : index
    %11 = vector.load %arg5[%c0_9, %c0_10, %c0_11] : memref<1x128x1xf32, #tpu.memory_space<vmem>>, vector<1x128x1xf32>
    %12 = vector.shape_cast %11 : vector<1x128x1xf32> to vector<128x1xf32>
    %13 = vector.broadcast %12 : vector<128x1xf32> to vector<128x128xf32>
    %14 = arith.mulf %13, %9 : vector<128x128xf32>
    %15 = arith.addf %10, %14 : vector<128x128xf32>
    %c0_12 = arith.constant 0 : index
    %c0_13 = arith.constant 0 : index
    %16 = vector.load %arg7[%c0_12, %c0_13] : memref<128x128xf32, #tpu.memory_space<vmem>>, vector<128x128xf32>
    tpu.vector_store %arg7[%c0_12, %c0_13], %15 {strides = array<i32>} : memref<128x128xf32, #tpu.memory_space<vmem>>, vector<128x128xf32>,
    %c2_i32 = arith.constant 2 : i32
    %17 = arith.cmpi eq, %arg1, %c2_i32 : i32
    %c0_i32_14 = arith.constant 0 : i32
    %18 = arith.cmpi eq, %arg2, %c0_i32_14 : i32
    %19 = arith.andi %17, %18 : i1
    %20 = arith.extui %19 : i1 to i32
    %c0_i32_15 = arith.constant 0 : i32
    %21 = arith.cmpi ne, %20, %c0_i32_15 : i32
    scf.if %21 {
      %c0_16 = arith.constant 0 : index
      %c0_17 = arith.constant 0 : index
      %22 = vector.load %arg7[%c0_16, %c0_17] : memref<128x128xf32, #tpu.memory_space<vmem>>, vector<128x128xf32>
      %c0_18 = arith.constant 0 : index
      %c0_19 = arith.constant 0 : index
      %23 = vector.load %arg6[%c0_18, %c0_19] : memref<1x128xf32, #tpu.memory_space<vmem>>, vector<1x128xf32>
      %24 = vector.broadcast %23 : vector<1x128xf32> to vector<128x128xf32>
      %25 = arith.addf %22, %24 : vector<128x128xf32>
      %cst_20 = arith.constant 0.000000e+00 : f32
      %26 = vector.broadcast %cst_20 : f32 to vector<128x128xf32>
      %27 = arith.maximumf %25, %26 : vector<128x128xf32>
      %c0_21 = arith.constant 0 : index
      %c0_22 = arith.constant 0 : index
      %28 = vector.load %arg7[%c0_21, %c0_22] : memref<128x128xf32, #tpu.memory_space<vmem>>, vector<128x128xf32>
      tpu.vector_store %arg7[%c0_21, %c0_22], %27 {strides = array<i32>} : memref<128x128xf32, #tpu.memory_space<vmem>>, vector<128x128xf32>,
    } else {
    }
    return
  }
  func.func @transform_0(%arg0: i32, %arg1: i32, %arg2: i32) -> (i32, i32, i32) {
    %c0_i32 = arith.constant 0 : i32
    return %arg1, %arg0, %arg2 : i32, i32, i32
  }
  func.func @transform_1(%arg0: i32, %arg1: i32, %arg2: i32) -> (i32, i32, i32) {
    %c0_i32 = arith.constant 0 : i32
    %c0_i32_0 = arith.constant 0 : i32
    return %arg1, %arg2, %c0_i32 : i32, i32, i32
  }
  func.func @transform_2(%arg0: i32, %arg1: i32, %arg2: i32) -> (i32, i32, i32) {
    %c0_i32 = arith.constant 0 : i32
    %c0_i32_0 = arith.constant 0 : i32
    return %arg1, %arg0, %c0_i32 : i32, i32, i32
  }
  func.func @transform_3(%arg0: i32, %arg1: i32, %arg2: i32) -> (i32, i32) {
    %c0_i32 = arith.constant 0 : i32
    %c0_i32_0 = arith.constant 0 : i32
    %c0_i32_1 = arith.constant 0 : i32
    return %c0_i32, %c0_i32_0 : i32, i32
  }
  func.func @transform_4(%arg0: i32, %arg1: i32, %arg2: i32) -> (i32, i32) {
    %c0_i32 = arith.constant 0 : i32
    %c0_i32_0 = arith.constant 0 : i32
    return %arg0, %c0_i32 : i32, i32
  }
}

module attributes {stable_mosaic.version = 11 : i64} {
  func.func @_proj_kernel(%arg0: i32, %arg1: i32, %arg2: memref<128x32xf32, #tpu.memory_space<vmem>>, %arg3: memref<1x32x128xf32, #tpu.memory_space<vmem>>, %arg4: memref<1x128x128xf32, #tpu.memory_space<vmem>>) attributes {dimension_semantics = [#tpu.dimension_semantics<parallel>, #tpu.dimension_semantics<parallel>], iteration_bounds = array<i64: 3, 1>, scalar_prefetch = 0 : i64, scratch_operands = 0 : i64, tpu.core_type = #tpu.core_type<tc>, window_params = [{transform_indices = @transform_0, window_bounds = array<i64: 128, 32>}, {transform_indices = @transform_1, window_bounds = array<i64: 1, 32, 128>}, {transform_indices = @transform_2, window_bounds = array<i64: 1, 128, 128>}]} {
    %c0 = arith.constant 0 : index
    %c0_0 = arith.constant 0 : index
    %0 = vector.load %arg2[%c0, %c0_0] : memref<128x32xf32, #tpu.memory_space<vmem>>, vector<128x32xf32>
    %c0_1 = arith.constant 0 : index
    %c0_2 = arith.constant 0 : index
    %c0_3 = arith.constant 0 : index
    %1 = vector.load %arg3[%c0_1, %c0_2, %c0_3] : memref<1x32x128xf32, #tpu.memory_space<vmem>>, vector<1x32x128xf32>
    %2 = vector.shape_cast %1 : vector<1x32x128xf32> to vector<32x128xf32>
    %cst = arith.constant dense<0.000000e+00> : vector<128x128xf32>
    %3 = tpu.matmul %0, %2, %cst {dimension_numbers = #tpu.dot_dimension_numbers<[1], [0], [0], [1], [0, 0, 1, 1], [], []>} : vector<128x32xf32>, vector<32x128xf32>, vector<128x128xf32> -> vector<128x128xf32>
    %c0_4 = arith.constant 0 : index
    %c0_5 = arith.constant 0 : index
    %c0_6 = arith.constant 0 : index
    %4 = vector.load %arg4[%c0_4, %c0_5, %c0_6] : memref<1x128x128xf32, #tpu.memory_space<vmem>>, vector<1x128x128xf32>
    %5 = vector.shape_cast %4 : vector<1x128x128xf32> to vector<128x128xf32>
    %6 = vector.shape_cast %3 : vector<128x128xf32> to vector<1x128x128xf32>
    tpu.vector_store %arg4[%c0_4, %c0_5, %c0_6], %6 {strides = array<i32>} : memref<1x128x128xf32, #tpu.memory_space<vmem>>, vector<1x128x128xf32>,
    return
  }
  func.func @transform_0(%arg0: i32, %arg1: i32) -> (i32, i32) {
    %c0_i32 = arith.constant 0 : i32
    %c0_i32_0 = arith.constant 0 : i32
    return %arg1, %c0_i32 : i32, i32
  }
  func.func @transform_1(%arg0: i32, %arg1: i32) -> (i32, i32, i32) {
    %c0_i32 = arith.constant 0 : i32
    %c0_i32_0 = arith.constant 0 : i32
    %c0_i32_1 = arith.constant 0 : i32
    return %arg0, %c0_i32, %c0_i32_0 : i32, i32, i32
  }
  func.func @transform_2(%arg0: i32, %arg1: i32) -> (i32, i32, i32) {
    %c0_i32 = arith.constant 0 : i32
    %c0_i32_0 = arith.constant 0 : i32
    return %arg0, %arg1, %c0_i32 : i32, i32, i32
  }
}

</mosaic_0001>

<llo_original>
// kernel: rel_graph_conv_layer.2
$region0: #{rel_graph_conv_layer.2}
  #allocation0 [shape = 'u32[]', space=smem, size = 0x4, offset = 0x4, fixed_abs, tag = 'smem constant byte address 0x4 - core index']
  #allocation1 [shape = 'u32[144,128]{1,0:T(1,128)}', space=vmem, size = 0x12000, scoped, tag = 'internal scratch']
  %s0 = inlined_call_operand.vmem [shape: f32[128,32], index: 0, kind: input, shape index: {}]
  %s1 = inlined_call_operand.vmem [shape: f32[3,32,128], index: 1, kind: input, shape index: {}]
  %s2 = inlined_call_operand.vmem [shape: f32[3,128,128], index: 2, kind: output, shape index: {}]
  %s3 = sld [smem:[#allocation0]]
  $region41: #{rel_graph_conv_layer.2} parent=0
    _
  %s5 = ssub.s32 1, %s3
  %s6 = scalar_select 0, %s5, %s3
  loop: start=0, step=1, limit=5
  $region2: #{rel_graph_conv_layer.2} parent=0 // loop_pre_header
    _
  $region3: #{rel_graph_conv_layer.2} parent=0 // loop_header
    %s8 = sphi 0, %s12
    %p9 = scmp.ge.s32.totalorder %s8, 5
    %s15 = sphi 0, %s27
    %s16 = sphi 0, %s23
    %s17 = sphi 0, %s15
    %s18 = sphi 0, %s16
    %s19 = sphi 0, %s17
    %s20 = sphi 0, %s18
    %s30 = sphi 0, %s32
    %s33 = sphi 0, %s30
    %s34 = sphi 0, %s33
    %s50 = sphi 0, %s34
    %s56 = sphi 0, %s58
    %s59 = sphi 0, %s56
    %s60 = sphi 0, %s59
    %s76 = sphi 0, %s60
    %s84 = sphi 0, %s86
    %s87 = sphi 0, %s84
    %s88 = sphi 0, %s87
    %s104 = sphi 0, %s88
  $region4: #{rel_graph_conv_layer.2} parent=0 // loop_header_branch
    %11 = sbr.rel (%p9) target = $region8
  $region5: #{rel_graph_conv_layer.2} parent=0 // loop_body
    %s13 = ssub.s32 %s8, 1
    %s14 = ssub.s32 %s8, 2
    %s21 = sadd.s32 1, %s16
    %p22 = scmp.ge.s32.totalorder %s21, 1
    %s23 = scalar_select %p22, 0, %s21
    %s24 = sadd.s32 1, %s15
    %s25 = scalar_select %p22, %s24, %s15
    %p26 = scmp.ge.s32.totalorder %s25, 3
    %s27 = scalar_select %p26, 0, %s25
    %s28 = ssub.s32 %s16, %s23
    %p29 = scmp.eq.s32.totalorder %s28, 0
    %s31 = sadd.s32 %s30, 1
    %s32 = scalar_select %p29, %s30, %s31
    %p35 = pneg %p29
    %p36 = scmp.eq.s32.totalorder %s8, 2
    %p37 = por %p35, %p36
    %p38 = scmp.ne.s32.totalorder %s30, %s33
    %p39 = scmp.eq.s32.totalorder %s8, 0
    %p40 = por %p38, %p39
    %p41 = scmp.ne.s32.totalorder %s30, %s33
    %p42 = scmp.eq.s32.totalorder %s13, 2
    %p43 = por %p41, %p42
    %p44 = scmp.ne.s32.totalorder %s33, %s34
    %p45 = scmp.eq.s32.totalorder %s13, 0
    %p46 = por %p44, %p45
    %p47 = scmp.ne.s32.totalorder %s33, %s34
    %p48 = scmp.eq.s32.totalorder %s14, 2
    %p49 = por %p47, %p48
    %p51 = scmp.ne.s32.totalorder %s34, %s50
    %p52 = scmp.eq.s32.totalorder %s14, 0
    %p53 = por %p51, %p52
    %s54 = ssub.s32 %s15, %s27
    %p55 = scmp.eq.s32.totalorder %s54, 0
    %s57 = sadd.s32 %s56, 1
    %s58 = scalar_select %p55, %s56, %s57
    %p61 = pneg %p55
    %p62 = scmp.eq.s32.totalorder %s8, 2
    %p63 = por %p61, %p62
    %p64 = scmp.ne.s32.totalorder %s56, %s59
    %p65 = scmp.eq.s32.totalorder %s8, 0
    %p66 = por %p64, %p65
    %p67 = scmp.ne.s32.totalorder %s56, %s59
    %p68 = scmp.eq.s32.totalorder %s13, 2
    %p69 = por %p67, %p68
    %p70 = scmp.ne.s32.totalorder %s59, %s60
    %p71 = scmp.eq.s32.totalorder %s13, 0
    %p72 = por %p70, %p71
    %p73 = scmp.ne.s32.totalorder %s59, %s60
    %p74 = scmp.eq.s32.totalorder %s14, 2
    %p75 = por %p73, %p74
    %p77 = scmp.ne.s32.totalorder %s60, %s76
    %p78 = scmp.eq.s32.totalorder %s14, 0
    %p79 = por %p77, %p78
    %s80 = ssub.s32 %s15, %s27
    %s81 = ssub.s32 %s16, %s23
    %s82 = sor.u32 %s80, %s81
    %p83 = scmp.eq.s32.totalorder %s82, 0
    %s85 = sadd.s32 %s84, 1
    %s86 = scalar_select %p83, %s84, %s85
    %p89 = pneg %p83
    %p90 = scmp.eq.s32.totalorder %s8, 2
    %p91 = por %p89, %p90
    %p92 = scmp.ne.s32.totalorder %s84, %s87
    %p93 = scmp.eq.s32.totalorder %s8, 0
    %p94 = por %p92, %p93
    %p95 = scmp.ne.s32.totalorder %s84, %s87
    %p96 = scmp.eq.s32.totalorder %s13, 2
    %p97 = por %p95, %p96
    %p98 = scmp.ne.s32.totalorder %s87, %s88
    %p99 = scmp.eq.s32.totalorder %s13, 0
    %p100 = por %p98, %p99
    %p101 = scmp.ne.s32.totalorder %s87, %s88
    %p102 = scmp.eq.s32.totalorder %s14, 2
    %p103 = por %p101, %p102
    %p105 = scmp.ne.s32.totalorder %s88, %s104
    %p106 = scmp.eq.s32.totalorder %s14, 0
    %p107 = por %p105, %p106
    %p108 = scmp.le.s32.totalorder 1, %s8
    %p109 = scmp.lt.s32.totalorder %s8, 4
    %p110 = pnand %p108, %p109
    %p111 = pneg %p110
    // Predicated region
    $region9: #{rel_graph_conv_layer.2} parent=5 // pred_check
      _
    $region10: #{rel_graph_conv_layer.2} parent=5 // pred_check_branch
      %113 = sbr.rel (%p110) target = $region12
    $region11: #{rel_graph_conv_layer.2} parent=5 // pred_region
      %s114 = ssub.s32 %s8, 1
      // Predicated region
      $region13: #{rel_graph_conv_layer.2} parent=11 // pred_check
        %p115 = pneg %p46
      $region14: #{rel_graph_conv_layer.2} parent=11 // pred_check_branch
        %117 = sbr.rel (%p115) target = $region16
      $region15: #{rel_graph_conv_layer.2} parent=11 // pred_region
        %s118 = smul.u32 16, %s18
        %p119 = scmp.lt.s32.totalorder %s118, 15
        %s120 = scalar_select %p119, %s118, 15
        %s121 = smul.addr %s120, 8
        %s122 = scalar_lea.vmem %s0, %s121
        %s123 = smul.u32 16, %s18
      $region16: #{rel_graph_conv_layer.2} parent=11 // pred_fallthru
        _
    $region12: #{rel_graph_conv_layer.2} parent=5 // pred_fallthru
      _
    %p124 = scmp.lt.s32.totalorder %s8, 3
    // Predicated region
    $region17: #{rel_graph_conv_layer.2} parent=5 // pred_check
      %p125 = pneg %p124
    $region18: #{rel_graph_conv_layer.2} parent=5 // pred_check_branch
      %127 = sbr.rel (%p125) target = $region20
    $region19: #{rel_graph_conv_layer.2} parent=5 // pred_region
      // Predicated region
      $region21: #{rel_graph_conv_layer.2} parent=19 // pred_check
        %p128 = pneg %p66
      $region22: #{rel_graph_conv_layer.2} parent=19 // pred_check_branch
        %130 = sbr.rel (%p128) target = $region24
      $region23: #{rel_graph_conv_layer.2} parent=19 // pred_region
        %p131 = scmp.lt.s32.totalorder %s15, 2
        %s132 = scalar_select %p131, %s15, 2
        %s133 = smul.addr %s132, 4
        %s134 = smul.addr %s133, 8
        %s135 = scalar_lea.vmem %s1, %s134
      $region24: #{rel_graph_conv_layer.2} parent=19 // pred_fallthru
        _
    $region20: #{rel_graph_conv_layer.2} parent=5 // pred_fallthru
      _
    %p136 = scmp.le.s32.totalorder 1, %s8
    %p137 = scmp.lt.s32.totalorder %s8, 4
    %p138 = pnand %p136, %p137
    %p139 = pneg %p138
    // Predicated region
    $region25: #{rel_graph_conv_layer.2} parent=5 // pred_check
      _
    $region26: #{rel_graph_conv_layer.2} parent=5 // pred_check_branch
      %141 = sbr.rel (%p138) target = $region28
    $region27: #{rel_graph_conv_layer.2} parent=5 // pred_region
      %s142 = ssub.s32 %s8, 1
      %s143 = smul.u32 16, %s18
      %p144 = scmp.lt.s32.totalorder %s143, 15
      %s145 = scalar_select %p144, %s143, 15
      %s146 = smul.addr %s145, 8
      %s147 = scalar_lea.vmem %s0, %s146
      %p148 = pneg %p46
      %p149 = pneg %p43
      %p150 = scmp.lt.s32.totalorder %s17, 2
      %s151 = scalar_select %p150, %s17, 2
      %s152 = smul.addr %s151, 4
      %s153 = smul.addr %s152, 8
      %s154 = scalar_lea.vmem %s1, %s153
      %p155 = pneg %p72
      %p156 = pneg %p69
      %p157 = pneg %p100
      %p158 = pneg %p97
      %s159 = smul.u32 16, %s18
      %p160 = scmp.lt.s32.totalorder %s17, 2
      %s161 = scalar_select %p160, %s17, 2
      %p162 = scmp.lt.s32.totalorder %s159, 15
      %s163 = scalar_select %p162, %s159, 15
      %s164 = smul.addr %s161, 16
      %s165 = sadd.s32 %s163, %s164
      %s166 = smul.addr %s165, 8
      %s167 = scalar_lea.vmem %s2, %s166
      %s168 = smul.u32 16, %s18
      %p169 = scmp.lt.s32.totalorder %s168, 15
      %s170 = scalar_select %p169, %s168, 15
      %s171 = smul.addr %s170, 8
      %s172 = scalar_lea.vmem %s0, %s171
      %s173 = smul.u32 16, %s18
      %p174 = scmp.lt.s32.totalorder %s17, 2
      %s175 = scalar_select %p174, %s17, 2
      %s176 = smul.addr %s175, 4
      %s177 = smul.addr %s176, 8
      %s178 = scalar_lea.vmem %s1, %s177
      %s179 = smul.u32 16, %s18
      %p180 = scmp.lt.s32.totalorder %s17, 2
      %s181 = scalar_select %p180, %s17, 2
      %p182 = scmp.lt.s32.totalorder %s179, 15
      %s183 = scalar_select %p182, %s179, 15
      %s184 = smul.addr %s181, 16
      %s185 = sadd.s32 %s183, %s184
      %s186 = smul.addr %s185, 8
      %s187 = scalar_lea.vmem %s2, %s186
      %s188 = smul.u32 16, %s18
      %v189 = vld [vmem:[%s172] sm:$0xff]
      %v190 = vld [vmem:[%s172 + $0x8] sm:$0xff]
      %v191 = vld [vmem:[%s172 + $0x10] sm:$0xff]
      %v192 = vld [vmem:[%s172 + $0x18] sm:$0xff]
      %v193 = vld [vmem:[%s172 + $0x20] sm:$0xff]
      %v194 = vld [vmem:[%s172 + $0x28] sm:$0xff]
      %v195 = vld [vmem:[%s172 + $0x30] sm:$0xff]
      %v196 = vld [vmem:[%s172 + $0x38] sm:$0xff]
      %v197 = vld [vmem:[%s172 + $0x40] sm:$0xff]
      %v198 = vld [vmem:[%s172 + $0x48] sm:$0xff]
      %v199 = vld [vmem:[%s172 + $0x50] sm:$0xff]
      %v200 = vld [vmem:[%s172 + $0x58] sm:$0xff]
      %v201 = vld [vmem:[%s172 + $0x60] sm:$0xff]
      %v202 = vld [vmem:[%s172 + $0x68] sm:$0xff]
      %v203 = vld [vmem:[%s172 + $0x70] sm:$0xff]
      %v204 = vld [vmem:[%s172 + $0x78] sm:$0xff]
      %v205 = vld [vmem:[%s178] sm:$0xff]
      %v206 = vld [vmem:[%s178 + $0x8] sm:$0xff]
      %v207 = vld [vmem:[%s178 + $0x10] sm:$0xff]
      %v208 = vld [vmem:[%s178 + $0x18] sm:$0xff]
      %vm209 = vcmask 261120
      %v211 = vsel %vm209, %v189, 0
      %v214 = vsel %vm209, %v190, 0
      %v217 = vsel %vm209, %v191, 0
      %v220 = vsel %vm209, %v192, 0
      %v223 = vsel %vm209, %v193, 0
      %v226 = vsel %vm209, %v194, 0
      %v229 = vsel %vm209, %v195, 0
      %v232 = vsel %vm209, %v196, 0
      %v235 = vsel %vm209, %v197, 0
      %v238 = vsel %vm209, %v198, 0
      %v241 = vsel %vm209, %v199, 0
      %v244 = vsel %vm209, %v200, 0
      %v247 = vsel %vm209, %v201, 0
      %v250 = vsel %vm209, %v202, 0
      %v253 = vsel %vm209, %v203, 0
      %v256 = vsel %vm209, %v204, 0
      %258 = vmatprep.subr.mxu0 0.0
      %259 = vmatpush1.msra.mxu0 0.0
      %260 = vmatprep.subr.mxu0 0.0
      %261 = vmatpush1.msra.mxu0 0.0
      %262 = vmatprep.subr.mxu0 0.0
      %263 = vmatpush1.msra.mxu0 0.0
      %264 = vmatprep.subr.mxu0 0.0
      %265 = vmatpush1.msra.mxu0 0.0
      %266 = vmatprep.subr.mxu0 0.0
      %267 = vmatpush1.msra.mxu0 0.0
      %268 = vmatprep.subr.mxu0 0.0
      %269 = vmatpush1.msra.mxu0 0.0
      %270 = vmatprep.subr.mxu0 0.0
      %271 = vmatpush1.msra.mxu0 0.0
      %272 = vmatprep.subr.mxu0 0.0
      %273 = vmatpush1.msra.mxu0 0.0
      %274 = vmatprep.subr.mxu0 0.0
      %275 = vmatpush1.msra.mxu0 0.0
      %276 = vmatprep.subr.mxu0 0.0
      %277 = vmatpush1.msra.mxu0 0.0
      %278 = vmatprep.subr.mxu0 0.0
      %279 = vmatpush1.msra.mxu0 0.0
      %280 = vmatprep.subr.mxu0 0.0
      %281 = vmatpush1.msra.mxu0 0.0
      %282 = vmatprep.subr.mxu0 0.0
      %283 = vmatpush1.msra.mxu0 %v208
      %284 = vmatprep.subr.mxu0 0.0
      %285 = vmatpush1.msra.mxu0 %v207
      %286 = vmatprep.subr.mxu0 0.0
      %287 = vmatpush1.msra.mxu0 %v206
      %288 = vmatprep.subr.mxu0 0.0
      %289 = vmatpush1.msra.mxu0 %v205
      %290 = vmatprep.subr.mxu0 0.0
      %291 = vmatpush2.msra.mxu0 0.0
      %292 = vmatprep.subr.mxu0 0.0
      %293 = vmatpush2.msra.mxu0 0.0
      %294 = vmatprep.subr.mxu0 0.0
      %295 = vmatpush2.msra.mxu0 0.0
      %296 = vmatprep.subr.mxu0 0.0
      %297 = vmatpush2.msra.mxu0 0.0
      %298 = vmatprep.subr.mxu0 0.0
      %299 = vmatpush2.msra.mxu0 0.0
      %300 = vmatprep.subr.mxu0 0.0
      %301 = vmatpush2.msra.mxu0 0.0
      %302 = vmatprep.subr.mxu0 0.0
      %303 = vmatpush2.msra.mxu0 0.0
      %304 = vmatprep.subr.mxu0 0.0
      %305 = vmatpush2.msra.mxu0 0.0
      %306 = vmatprep.subr.mxu0 0.0
      %307 = vmatpush2.msra.mxu0 0.0
      %308 = vmatprep.subr.mxu0 0.0
      %309 = vmatpush2.msra.mxu0 0.0
      %310 = vmatprep.subr.mxu0 0.0
      %311 = vmatpush2.msra.mxu0 0.0
      %312 = vmatprep.subr.mxu0 0.0
      %313 = vmatpush2.msra.mxu0 0.0
      %314 = vmatprep.subr.mxu0 0.0
      %315 = vmatpush2.msra.mxu0 0.0
      %316 = vmatprep.subr.mxu0 0.0
      %317 = vmatpush2.msra.mxu0 0.0
      %318 = vmatprep.subr.mxu0 0.0
      %319 = vmatpush2.msra.mxu0 0.0
      %320 = vmatprep.subr.mxu0 0.0
      %321 = vmatpush2.msra.mxu0 0.0
      %322 = vmatprep.mubr.f32.mxu0 0.0
      %323 = vmatmul.mubr.f32.gmra.mxu0 %v211
      %v324 = vpop.f32.mrf.mxu0
      %v325 = vadd.f32 0.0, %v324
      %v326 = vpop.f32.mrf.mxu0
      %327 = vmatprep.mubr.f32.mxu0 0.0
      %328 = vmatmul.mubr.f32.gmra.mxu0 %v214
      %v329 = vpop.f32.mrf.mxu0
      %v330 = vadd.f32 0.0, %v329
      %v331 = vpop.f32.mrf.mxu0
      %332 = vmatprep.mubr.f32.mxu0 0.0
      %333 = vmatmul.mubr.f32.gmra.mxu0 %v217
      %v334 = vpop.f32.mrf.mxu0
      %v335 = vadd.f32 0.0, %v334
      %v336 = vpop.f32.mrf.mxu0
      %337 = vmatprep.mubr.f32.mxu0 0.0
      %338 = vmatmul.mubr.f32.gmra.mxu0 %v220
      %v339 = vpop.f32.mrf.mxu0
      %v340 = vadd.f32 0.0, %v339
      %v341 = vpop.f32.mrf.mxu0
      %342 = vmatprep.mubr.f32.mxu0 0.0
      %343 = vmatmul.mubr.f32.gmra.mxu0 %v223
      %v344 = vpop.f32.mrf.mxu0
      %v345 = vadd.f32 0.0, %v344
      %v346 = vpop.f32.mrf.mxu0
      %347 = vmatprep.mubr.f32.mxu0 0.0
      %348 = vmatmul.mubr.f32.gmra.mxu0 %v226
      %v349 = vpop.f32.mrf.mxu0
      %v350 = vadd.f32 0.0, %v349
      %v351 = vpop.f32.mrf.mxu0
      %352 = vmatprep.mubr.f32.mxu0 0.0
      %353 = vmatmul.mubr.f32.gmra.mxu0 %v229
      %v354 = vpop.f32.mrf.mxu0
      %v355 = vadd.f32 0.0, %v354
      %v356 = vpop.f32.mrf.mxu0
      %357 = vmatprep.mubr.f32.mxu0 0.0
      %358 = vmatmul.mubr.f32.gmra.mxu0 %v232
      %v359 = vpop.f32.mrf.mxu0
      %v360 = vadd.f32 0.0, %v359
      %v361 = vpop.f32.mrf.mxu0
      %362 = vmatprep.mubr.f32.mxu0 0.0
      %363 = vmatmul.mubr.f32.gmra.mxu0 %v235
      %v364 = vpop.f32.mrf.mxu0
      %v365 = vadd.f32 0.0, %v364
      %v366 = vpop.f32.mrf.mxu0
      %367 = vmatprep.mubr.f32.mxu0 0.0
      %368 = vmatmul.mubr.f32.gmra.mxu0 %v238
      %v369 = vpop.f32.mrf.mxu0
      %v370 = vadd.f32 0.0, %v369
      %v371 = vpop.f32.mrf.mxu0
      %372 = vmatprep.mubr.f32.mxu0 0.0
      %373 = vmatmul.mubr.f32.gmra.mxu0 %v241
      %v374 = vpop.f32.mrf.mxu0
      %v375 = vadd.f32 0.0, %v374
      %v376 = vpop.f32.mrf.mxu0
      %377 = vmatprep.mubr.f32.mxu0 0.0
      %378 = vmatmul.mubr.f32.gmra.mxu0 %v244
      %v379 = vpop.f32.mrf.mxu0
      %v380 = vadd.f32 0.0, %v379
      %v381 = vpop.f32.mrf.mxu0
      %382 = vmatprep.mubr.f32.mxu0 0.0
      %383 = vmatmul.mubr.f32.gmra.mxu0 %v247
      %v384 = vpop.f32.mrf.mxu0
      %v385 = vadd.f32 0.0, %v384
      %v386 = vpop.f32.mrf.mxu0
      %387 = vmatprep.mubr.f32.mxu0 0.0
      %388 = vmatmul.mubr.f32.gmra.mxu0 %v250
      %v389 = vpop.f32.mrf.mxu0
      %v390 = vadd.f32 0.0, %v389
      %v391 = vpop.f32.mrf.mxu0
      %392 = vmatprep.mubr.f32.mxu0 0.0
      %393 = vmatmul.mubr.f32.gmra.mxu0 %v253
      %v394 = vpop.f32.mrf.mxu0
      %v395 = vadd.f32 0.0, %v394
      %v396 = vpop.f32.mrf.mxu0
      %397 = vmatprep.mubr.f32.mxu0 0.0
      %398 = vmatmul.mubr.f32.gmra.mxu0 %v256
      %v399 = vpop.f32.mrf.mxu0
      %v400 = vadd.f32 0.0, %v399
      %v401 = vpop.f32.mrf.mxu0
      %402 = vdwg.mxu0
      %403 = vst [vmem:[%s187] sm:$0xff] %v325
      %404 = vst [vmem:[%s187 + $0x8] sm:$0xff] %v330
      %405 = vst [vmem:[%s187 + $0x10] sm:$0xff] %v335
      %406 = vst [vmem:[%s187 + $0x18] sm:$0xff] %v340
      %407 = vst [vmem:[%s187 + $0x20] sm:$0xff] %v345
      %408 = vst [vmem:[%s187 + $0x28] sm:$0xff] %v350
      %409 = vst [vmem:[%s187 + $0x30] sm:$0xff] %v355
      %410 = vst [vmem:[%s187 + $0x38] sm:$0xff] %v360
      %411 = vst [vmem:[%s187 + $0x40] sm:$0xff] %v365
      %412 = vst [vmem:[%s187 + $0x48] sm:$0xff] %v370
      %413 = vst [vmem:[%s187 + $0x50] sm:$0xff] %v375
      %414 = vst [vmem:[%s187 + $0x58] sm:$0xff] %v380
      %415 = vst [vmem:[%s187 + $0x60] sm:$0xff] %v385
      %416 = vst [vmem:[%s187 + $0x68] sm:$0xff] %v390
      %417 = vst [vmem:[%s187 + $0x70] sm:$0xff] %v395
      %418 = vst [vmem:[%s187 + $0x78] sm:$0xff] %v400
      %s419 = smul.u32 16, %s18
      %p420 = scmp.lt.s32.totalorder %s17, 2
      %s421 = scalar_select %p420, %s17, 2
      %p422 = scmp.lt.s32.totalorder %s419, 15
      %s423 = scalar_select %p422, %s419, 15
      %s424 = smul.addr %s421, 16
      %s425 = sadd.s32 %s423, %s424
      %s426 = smul.addr %s425, 8
      %s427 = scalar_lea.vmem %s2, %s426
      // Predicated region
      $region29: #{rel_graph_conv_layer.2} parent=27 // pred_check
        %p428 = pneg %p97
      $region30: #{rel_graph_conv_layer.2} parent=27 // pred_check_branch
        %430 = sbr.rel (%p428) target = $region32
      $region31: #{rel_graph_conv_layer.2} parent=27 // pred_region
        %s431 = smul.u32 16, %s18
      $region32: #{rel_graph_conv_layer.2} parent=27 // pred_fallthru
        _
    $region28: #{rel_graph_conv_layer.2} parent=5 // pred_fallthru
      _
    %p432 = scmp.le.s32.totalorder 2, %s8
    // Predicated region
    $region33: #{rel_graph_conv_layer.2} parent=5 // pred_check
      %p433 = pneg %p432
    $region34: #{rel_graph_conv_layer.2} parent=5 // pred_check_branch
      %435 = sbr.rel (%p433) target = $region36
    $region35: #{rel_graph_conv_layer.2} parent=5 // pred_region
      %s436 = ssub.s32 %s8, 2
      // Predicated region
      $region37: #{rel_graph_conv_layer.2} parent=35 // pred_check
        %p437 = pneg %p103
      $region38: #{rel_graph_conv_layer.2} parent=35 // pred_check_branch
        %439 = sbr.rel (%p437) target = $region40
      $region39: #{rel_graph_conv_layer.2} parent=35 // pred_region
        %s440 = smul.u32 16, %s20
        %p441 = scmp.lt.s32.totalorder %s19, 2
        %s442 = scalar_select %p441, %s19, 2
        %p443 = scmp.lt.s32.totalorder %s440, 15
        %s444 = scalar_select %p443, %s440, 15
        %s445 = smul.addr %s442, 16
        %s446 = sadd.s32 %s444, %s445
        %s447 = smul.addr %s446, 8
        %s448 = scalar_lea.vmem %s2, %s447
      $region40: #{rel_graph_conv_layer.2} parent=35 // pred_fallthru
        _
    $region36: #{rel_graph_conv_layer.2} parent=5 // pred_fallthru
      _
  $region6: #{rel_graph_conv_layer.2} parent=0 // loop_footer
    %s12 = sadd.s32 1, %s8
  $region7: #{rel_graph_conv_layer.2} parent=0 // loop_footer_branch
    %7 = sbr.rel target = $region3
  $region8: #{rel_graph_conv_layer.2} parent=0 // loop_exit
    _

// kernel: rel_graph_conv_layer.3
$region0: #{rel_graph_conv_layer.3}
  #allocation0 [shape = 'u32[]', space=smem, size = 0x4, offset = 0x4, fixed_abs, tag = 'smem constant byte address 0x4 - core index']
  #allocation1 [shape = 'u32[144,128]{1,0:T(1,128)}', space=vmem, size = 0x12000, scoped, tag = 'internal scratch']
  %s0 = inlined_call_operand.vmem [shape: f32[3,128,128], index: 0, kind: input, shape index: {}]
  %s1 = inlined_call_operand.vmem [shape: f32[3,128,128], index: 1, kind: input, shape index: {}]
  %s2 = inlined_call_operand.vmem [shape: f32[3,128,1], index: 2, kind: input, shape index: {}]
  %s3 = inlined_call_operand.vmem [shape: f32[1,128], index: 3, kind: input, shape index: {}]
  %s4 = inlined_call_operand.vmem [shape: f32[128,128], index: 4, kind: output, shape index: {}]
  %s5 = sld [smem:[#allocation0]]
  $region57: #{rel_graph_conv_layer.3} parent=0
    _
  %s7 = ssub.s32 1, %s5
  %s8 = scalar_select 0, %s7, %s5
  loop: start=0, step=1, limit=5
  $region2: #{rel_graph_conv_layer.3} parent=0 // loop_pre_header
    _
  $region3: #{rel_graph_conv_layer.3} parent=0 // loop_header
    %s10 = sphi 0, %s14
    %p11 = scmp.ge.s32.totalorder %s10, 5
    %s17 = sphi 0, %s36
    %s18 = sphi 0, %s32
    %s19 = sphi 0, %s28
    %s20 = sphi 0, %s17
    %s21 = sphi 0, %s18
    %s22 = sphi 0, %s19
    %s23 = sphi 0, %s20
    %s24 = sphi 0, %s21
    %s25 = sphi 0, %s22
    %s43 = sphi 0, %s45
    %s46 = sphi 0, %s43
    %s47 = sphi 0, %s46
    %s63 = sphi 0, %s47
    %s71 = sphi 0, %s73
    %s74 = sphi 0, %s71
    %s75 = sphi 0, %s74
    %s91 = sphi 0, %s75
    %s99 = sphi 0, %s101
    %s102 = sphi 0, %s99
    %s103 = sphi 0, %s102
    %s119 = sphi 0, %s103
    %s123 = sphi 0, %s123
    %s125 = sphi 0, %s123
    %s126 = sphi 0, %s125
    %s140 = sphi 0, %s126
    %s146 = sphi 0, %s148
    %s149 = sphi 0, %s146
    %s150 = sphi 0, %s149
    %s166 = sphi 0, %s150
  $region4: #{rel_graph_conv_layer.3} parent=0 // loop_header_branch
    %13 = sbr.rel (%p11) target = $region8
  $region5: #{rel_graph_conv_layer.3} parent=0 // loop_body
    %s15 = ssub.s32 %s10, 1
    %s16 = ssub.s32 %s10, 2
    %s26 = sadd.s32 1, %s19
    %p27 = scmp.ge.s32.totalorder %s26, 1
    %s28 = scalar_select %p27, 0, %s26
    %s29 = sadd.s32 1, %s18
    %s30 = scalar_select %p27, %s29, %s18
    %p31 = scmp.ge.s32.totalorder %s30, 3
    %s32 = scalar_select %p31, 0, %s30
    %s33 = sadd.s32 1, %s17
    %s34 = scalar_select %p31, %s33, %s17
    %p35 = scmp.ge.s32.totalorder %s34, 1
    %s36 = scalar_select %p35, 0, %s34
    %s37 = ssub.s32 %s18, %s32
    %s38 = ssub.s32 %s17, %s36
    %s39 = sor.u32 %s37, %s38
    %s40 = ssub.s32 %s19, %s28
    %s41 = sor.u32 %s39, %s40
    %p42 = scmp.eq.s32.totalorder %s41, 0
    %s44 = sadd.s32 %s43, 1
    %s45 = scalar_select %p42, %s43, %s44
    %p48 = pneg %p42
    %p49 = scmp.eq.s32.totalorder %s10, 2
    %p50 = por %p48, %p49
    %p51 = scmp.ne.s32.totalorder %s43, %s46
    %p52 = scmp.eq.s32.totalorder %s10, 0
    %p53 = por %p51, %p52
    %p54 = scmp.ne.s32.totalorder %s43, %s46
    %p55 = scmp.eq.s32.totalorder %s15, 2
    %p56 = por %p54, %p55
    %p57 = scmp.ne.s32.totalorder %s46, %s47
    %p58 = scmp.eq.s32.totalorder %s15, 0
    %p59 = por %p57, %p58
    %p60 = scmp.ne.s32.totalorder %s46, %s47
    %p61 = scmp.eq.s32.totalorder %s16, 2
    %p62 = por %p60, %p61
    %p64 = scmp.ne.s32.totalorder %s47, %s63
    %p65 = scmp.eq.s32.totalorder %s16, 0
    %p66 = por %p64, %p65
    %s67 = ssub.s32 %s18, %s32
    %s68 = ssub.s32 %s19, %s28
    %s69 = sor.u32 %s67, %s68
    %p70 = scmp.eq.s32.totalorder %s69, 0
    %s72 = sadd.s32 %s71, 1
    %s73 = scalar_select %p70, %s71, %s72
    %p76 = pneg %p70
    %p77 = scmp.eq.s32.totalorder %s10, 2
    %p78 = por %p76, %p77
    %p79 = scmp.ne.s32.totalorder %s71, %s74
    %p80 = scmp.eq.s32.totalorder %s10, 0
    %p81 = por %p79, %p80
    %p82 = scmp.ne.s32.totalorder %s71, %s74
    %p83 = scmp.eq.s32.totalorder %s15, 2
    %p84 = por %p82, %p83
    %p85 = scmp.ne.s32.totalorder %s74, %s75
    %p86 = scmp.eq.s32.totalorder %s15, 0
    %p87 = por %p85, %p86
    %p88 = scmp.ne.s32.totalorder %s74, %s75
    %p89 = scmp.eq.s32.totalorder %s16, 2
    %p90 = por %p88, %p89
    %p92 = scmp.ne.s32.totalorder %s75, %s91
    %p93 = scmp.eq.s32.totalorder %s16, 0
    %p94 = por %p92, %p93
    %s95 = ssub.s32 %s18, %s32
    %s96 = ssub.s32 %s17, %s36
    %s97 = sor.u32 %s95, %s96
    %p98 = scmp.eq.s32.totalorder %s97, 0
    %s100 = sadd.s32 %s99, 1
    %s101 = scalar_select %p98, %s99, %s100
    %p104 = pneg %p98
    %p105 = scmp.eq.s32.totalorder %s10, 2
    %p106 = por %p104, %p105
    %p107 = scmp.ne.s32.totalorder %s99, %s102
    %p108 = scmp.eq.s32.totalorder %s10, 0
    %p109 = por %p107, %p108
    %p110 = scmp.ne.s32.totalorder %s99, %s102
    %p111 = scmp.eq.s32.totalorder %s15, 2
    %p112 = por %p110, %p111
    %p113 = scmp.ne.s32.totalorder %s102, %s103
    %p114 = scmp.eq.s32.totalorder %s15, 0
    %p115 = por %p113, %p114
    %p116 = scmp.ne.s32.totalorder %s102, %s103
    %p117 = scmp.eq.s32.totalorder %s16, 2
    %p118 = por %p116, %p117
    %p120 = scmp.ne.s32.totalorder %s103, %s119
    %p121 = scmp.eq.s32.totalorder %s16, 0
    %p122 = por %p120, %p121
    %s124 = sadd.s32 %s123, 1
    %p127 = scmp.eq.s32.totalorder %s10, 2
    %p128 = scmp.ne.s32.totalorder %s123, %s125
    %p129 = scmp.eq.s32.totalorder %s10, 0
    %p130 = por %p128, %p129
    %p131 = scmp.ne.s32.totalorder %s123, %s125
    %p132 = scmp.eq.s32.totalorder %s15, 2
    %p133 = por %p131, %p132
    %p134 = scmp.ne.s32.totalorder %s125, %s126
    %p135 = scmp.eq.s32.totalorder %s15, 0
    %p136 = por %p134, %p135
    %p137 = scmp.ne.s32.totalorder %s125, %s126
    %p138 = scmp.eq.s32.totalorder %s16, 2
    %p139 = por %p137, %p138
    %p141 = scmp.ne.s32.totalorder %s126, %s140
    %p142 = scmp.eq.s32.totalorder %s16, 0
    %p143 = por %p141, %p142
    %s144 = ssub.s32 %s17, %s36
    %p145 = scmp.eq.s32.totalorder %s144, 0
    %s147 = sadd.s32 %s146, 1
    %s148 = scalar_select %p145, %s146, %s147
    %p151 = pneg %p145
    %p152 = scmp.eq.s32.totalorder %s10, 2
    %p153 = por %p151, %p152
    %p154 = scmp.ne.s32.totalorder %s146, %s149
    %p155 = scmp.eq.s32.totalorder %s10, 0
    %p156 = por %p154, %p155
    %p157 = scmp.ne.s32.totalorder %s146, %s149
    %p158 = scmp.eq.s32.totalorder %s15, 2
    %p159 = por %p157, %p158
    %p160 = scmp.ne.s32.totalorder %s149, %s150
    %p161 = scmp.eq.s32.totalorder %s15, 0
    %p162 = por %p160, %p161
    %p163 = scmp.ne.s32.totalorder %s149, %s150
    %p164 = scmp.eq.s32.totalorder %s16, 2
    %p165 = por %p163, %p164
    %p167 = scmp.ne.s32.totalorder %s150, %s166
    %p168 = scmp.eq.s32.totalorder %s16, 0
    %p169 = por %p167, %p168
    %p170 = scmp.le.s32.totalorder 1, %s10
    %p171 = scmp.lt.s32.totalorder %s10, 4
    %p172 = pnand %p170, %p171
    %p173 = pneg %p172
    // Predicated region
    $region9: #{rel_graph_conv_layer.3} parent=5 // pred_check
      _
    $region10: #{rel_graph_conv_layer.3} parent=5 // pred_check_branch
      %175 = sbr.rel (%p172) target = $region12
    $region11: #{rel_graph_conv_layer.3} parent=5 // pred_region
      %s176 = ssub.s32 %s10, 1
      // Predicated region
      $region13: #{rel_graph_conv_layer.3} parent=11 // pred_check
        %p177 = pneg %p136
      $region14: #{rel_graph_conv_layer.3} parent=11 // pred_check_branch
        %179 = sbr.rel (%p177) target = $region16
      $region15: #{rel_graph_conv_layer.3} parent=11 // pred_region
        _
      $region16: #{rel_graph_conv_layer.3} parent=11 // pred_fallthru
        _
    $region12: #{rel_graph_conv_layer.3} parent=5 // pred_fallthru
      _
    %p180 = scmp.lt.s32.totalorder %s10, 3
    // Predicated region
    $region17: #{rel_graph_conv_layer.3} parent=5 // pred_check
      %p181 = pneg %p180
    $region18: #{rel_graph_conv_layer.3} parent=5 // pred_check_branch
      %183 = sbr.rel (%p181) target = $region20
    $region19: #{rel_graph_conv_layer.3} parent=5 // pred_region
      // Predicated region
      $region21: #{rel_graph_conv_layer.3} parent=19 // pred_check
        %p184 = pneg %p53
      $region22: #{rel_graph_conv_layer.3} parent=19 // pred_check_branch
        %186 = sbr.rel (%p184) target = $region24
      $region23: #{rel_graph_conv_layer.3} parent=19 // pred_region
        %s187 = smul.u32 16, %s17
        %p188 = scmp.lt.s32.totalorder %s18, 2
        %s189 = scalar_select %p188, %s18, 2
        %p190 = scmp.lt.s32.totalorder %s187, 15
        %s191 = scalar_select %p190, %s187, 15
        %p192 = scmp.lt.s32.totalorder %s19, 0
        %s193 = scalar_select %p192, %s19, 0
        %s194 = sadd.s32 %s193, %s191
        %s195 = smul.addr %s189, 16
        %s196 = sadd.s32 %s194, %s195
        %s197 = smul.addr %s196, 8
        %s198 = scalar_lea.vmem %s0, %s197
        %s199 = smul.u32 16, %s17
      $region24: #{rel_graph_conv_layer.3} parent=19 // pred_fallthru
        _
      // Predicated region
      $region25: #{rel_graph_conv_layer.3} parent=19 // pred_check
        %p200 = pneg %p81
      $region26: #{rel_graph_conv_layer.3} parent=19 // pred_check_branch
        %202 = sbr.rel (%p200) target = $region28
      $region27: #{rel_graph_conv_layer.3} parent=19 // pred_region
        %s203 = smul.u32 16, %s19
        %p204 = scmp.lt.s32.totalorder %s18, 2
        %s205 = scalar_select %p204, %s18, 2
        %p206 = scmp.lt.s32.totalorder %s203, 15
        %s207 = scalar_select %p206, %s203, 15
        %s208 = smul.addr %s205, 16
        %s209 = sadd.s32 %s207, %s208
        %s210 = smul.addr %s209, 8
        %s211 = scalar_lea.vmem %s1, %s210
        %s212 = smul.u32 16, %s19
      $region28: #{rel_graph_conv_layer.3} parent=19 // pred_fallthru
        _
      // Predicated region
      $region29: #{rel_graph_conv_layer.3} parent=19 // pred_check
        %p213 = pneg %p109
      $region30: #{rel_graph_conv_layer.3} parent=19 // pred_check_branch
        %215 = sbr.rel (%p213) target = $region32
      $region31: #{rel_graph_conv_layer.3} parent=19 // pred_region
        %s216 = smul.u32 16, %s17
        %p217 = scmp.lt.s32.totalorder %s18, 2
        %s218 = scalar_select %p217, %s18, 2
        %p219 = scmp.lt.s32.totalorder %s216, 15
        %s220 = scalar_select %p219, %s216, 15
        %s221 = smul.addr %s218, 16
        %s222 = sadd.s32 %s220, %s221
        %s223 = smul.addr %s222, 8
        %s224 = scalar_lea.vmem %s2, %s223
        %s225 = smul.u32 16, %s17
      $region32: #{rel_graph_conv_layer.3} parent=19 // pred_fallthru
        _
    $region20: #{rel_graph_conv_layer.3} parent=5 // pred_fallthru
      _
    %p226 = scmp.le.s32.totalorder 1, %s10
    %p227 = scmp.lt.s32.totalorder %s10, 4
    %p228 = pnand %p226, %p227
    %p229 = pneg %p228
    // Predicated region
    $region33: #{rel_graph_conv_layer.3} parent=5 // pred_check
      _
    $region34: #{rel_graph_conv_layer.3} parent=5 // pred_check_branch
      %231 = sbr.rel (%p228) target = $region36
    $region35: #{rel_graph_conv_layer.3} parent=5 // pred_region
      %s232 = ssub.s32 %s10, 1
      %s233 = smul.u32 16, %s20
      %p234 = scmp.lt.s32.totalorder %s21, 2
      %s235 = scalar_select %p234, %s21, 2
      %p236 = scmp.lt.s32.totalorder %s233, 15
      %s237 = scalar_select %p236, %s233, 15
      %p238 = scmp.lt.s32.totalorder %s22, 0
      %s239 = scalar_select %p238, %s22, 0
      %s240 = sadd.s32 %s239, %s237
      %s241 = smul.addr %s235, 16
      %s242 = sadd.s32 %s240, %s241
      %s243 = smul.addr %s242, 8
      %s244 = scalar_lea.vmem %s0, %s243
      %p245 = pneg %p59
      %p246 = pneg %p56
      %s247 = smul.u32 16, %s22
      %p248 = scmp.lt.s32.totalorder %s21, 2
      %s249 = scalar_select %p248, %s21, 2
      %p250 = scmp.lt.s32.totalorder %s247, 15
      %s251 = scalar_select %p250, %s247, 15
      %s252 = smul.addr %s249, 16
      %s253 = sadd.s32 %s251, %s252
      %s254 = smul.addr %s253, 8
      %s255 = scalar_lea.vmem %s1, %s254
      %p256 = pneg %p87
      %p257 = pneg %p84
      %s258 = smul.u32 16, %s20
      %p259 = scmp.lt.s32.totalorder %s21, 2
      %s260 = scalar_select %p259, %s21, 2
      %p261 = scmp.lt.s32.totalorder %s258, 15
      %s262 = scalar_select %p261, %s258, 15
      %s263 = smul.addr %s260, 16
      %s264 = sadd.s32 %s262, %s263
      %s265 = smul.addr %s264, 8
      %s266 = scalar_lea.vmem %s2, %s265
      %p267 = pneg %p115
      %p268 = pneg %p112
      %p269 = pneg %p136
      %p270 = pneg %p133
      %p271 = pneg %p162
      %p272 = pneg %p159
      %s273 = smul.u32 16, %s20
      %p274 = scmp.lt.s32.totalorder %s273, 15
      %s275 = scalar_select %p274, %s273, 15
      %s276 = smul.addr %s275, 8
      %s277 = scalar_lea.vmem %s4, %s276
      %s278 = smul.u32 16, %s20
      %p279 = scmp.lt.s32.totalorder %s21, 2
      %s280 = scalar_select %p279, %s21, 2
      %p281 = scmp.lt.s32.totalorder %s278, 15
      %s282 = scalar_select %p281, %s278, 15
      %p283 = scmp.lt.s32.totalorder %s22, 0
      %s284 = scalar_select %p283, %s22, 0
      %s285 = sadd.s32 %s284, %s282
      %s286 = smul.addr %s280, 16
      %s287 = sadd.s32 %s285, %s286
      %s288 = smul.addr %s287, 8
      %s289 = scalar_lea.vmem %s0, %s288
      %s290 = smul.u32 16, %s20
      %s291 = smul.u32 16, %s22
      %p292 = scmp.lt.s32.totalorder %s21, 2
      %s293 = scalar_select %p292, %s21, 2
      %p294 = scmp.lt.s32.totalorder %s291, 15
      %s295 = scalar_select %p294, %s291, 15
      %s296 = smul.addr %s293, 16
      %s297 = sadd.s32 %s295, %s296
      %s298 = smul.addr %s297, 8
      %s299 = scalar_lea.vmem %s1, %s298
      %s300 = smul.u32 16, %s22
      %s301 = smul.u32 16, %s20
      %p302 = scmp.lt.s32.totalorder %s21, 2
      %s303 = scalar_select %p302, %s21, 2
      %p304 = scmp.lt.s32.totalorder %s301, 15
      %s305 = scalar_select %p304, %s301, 15
      %s306 = smul.addr %s303, 16
      %s307 = sadd.s32 %s305, %s306
      %s308 = smul.addr %s307, 8
      %s309 = scalar_lea.vmem %s2, %s308
      %s310 = smul.u32 16, %s20
      %s311 = smul.u32 16, %s20
      %p312 = scmp.lt.s32.totalorder %s311, 15
      %s313 = scalar_select %p312, %s311, 15
      %s314 = smul.addr %s313, 8
      %s315 = scalar_lea.vmem %s4, %s314
      %s316 = smul.u32 16, %s20
      %p317 = scmp.eq.s32.totalorder %s21, 0
      %p318 = scmp.eq.s32.totalorder %s22, 0
      %p319 = pnand %p317, %p318
      %p320 = pneg %p319
      // Predicated region
      $region37: #{rel_graph_conv_layer.3} parent=35 // pred_check
        _
      $region38: #{rel_graph_conv_layer.3} parent=35 // pred_check_branch
        %322 = sbr.rel (%p319) target = $region40
      $region39: #{rel_graph_conv_layer.3} parent=35 // pred_region
        %323 = vst [vmem:[%s315] sm:$0xff] 0.0
        %324 = vst [vmem:[%s315 + $0x8] sm:$0xff] 0.0
        %325 = vst [vmem:[%s315 + $0x10] sm:$0xff] 0.0
        %326 = vst [vmem:[%s315 + $0x18] sm:$0xff] 0.0
        %327 = vst [vmem:[%s315 + $0x20] sm:$0xff] 0.0
        %328 = vst [vmem:[%s315 + $0x28] sm:$0xff] 0.0
        %329 = vst [vmem:[%s315 + $0x30] sm:$0xff] 0.0
        %330 = vst [vmem:[%s315 + $0x38] sm:$0xff] 0.0
        %331 = vst [vmem:[%s315 + $0x40] sm:$0xff] 0.0
        %332 = vst [vmem:[%s315 + $0x48] sm:$0xff] 0.0
        %333 = vst [vmem:[%s315 + $0x50] sm:$0xff] 0.0
        %334 = vst [vmem:[%s315 + $0x58] sm:$0xff] 0.0
        %335 = vst [vmem:[%s315 + $0x60] sm:$0xff] 0.0
        %336 = vst [vmem:[%s315 + $0x68] sm:$0xff] 0.0
        %337 = vst [vmem:[%s315 + $0x70] sm:$0xff] 0.0
        %338 = vst [vmem:[%s315 + $0x78] sm:$0xff] 0.0
      $region40: #{rel_graph_conv_layer.3} parent=35 // pred_fallthru
        _
      %v339 = vld [vmem:[%s289] sm:$0xff]
      %v340 = vld [vmem:[%s289 + $0x8] sm:$0xff]
      %v341 = vld [vmem:[%s289 + $0x10] sm:$0xff]
      %v342 = vld [vmem:[%s289 + $0x18] sm:$0xff]
      %v343 = vld [vmem:[%s289 + $0x20] sm:$0xff]
      %v344 = vld [vmem:[%s289 + $0x28] sm:$0xff]
      %v345 = vld [vmem:[%s289 + $0x30] sm:$0xff]
      %v346 = vld [vmem:[%s289 + $0x38] sm:$0xff]
      %v347 = vld [vmem:[%s289 + $0x40] sm:$0xff]
      %v348 = vld [vmem:[%s289 + $0x48] sm:$0xff]
      %v349 = vld [vmem:[%s289 + $0x50] sm:$0xff]
      %v350 = vld [vmem:[%s289 + $0x58] sm:$0xff]
      %v351 = vld [vmem:[%s289 + $0x60] sm:$0xff]
      %v352 = vld [vmem:[%s289 + $0x68] sm:$0xff]
      %v353 = vld [vmem:[%s289 + $0x70] sm:$0xff]
      %v354 = vld [vmem:[%s289 + $0x78] sm:$0xff]
      %v355 = vld [vmem:[%s299] sm:$0xff]
      %v356 = vld [vmem:[%s299 + $0x8] sm:$0xff]
      %v357 = vld [vmem:[%s299 + $0x10] sm:$0xff]
      %v358 = vld [vmem:[%s299 + $0x18] sm:$0xff]
      %v359 = vld [vmem:[%s299 + $0x20] sm:$0xff]
      %v360 = vld [vmem:[%s299 + $0x28] sm:$0xff]
      %v361 = vld [vmem:[%s299 + $0x30] sm:$0xff]
      %v362 = vld [vmem:[%s299 + $0x38] sm:$0xff]
      %v363 = vld [vmem:[%s299 + $0x40] sm:$0xff]
      %v364 = vld [vmem:[%s299 + $0x48] sm:$0xff]
      %v365 = vld [vmem:[%s299 + $0x50] sm:$0xff]
      %v366 = vld [vmem:[%s299 + $0x58] sm:$0xff]
      %v367 = vld [vmem:[%s299 + $0x60] sm:$0xff]
      %v368 = vld [vmem:[%s299 + $0x68] sm:$0xff]
      %v369 = vld [vmem:[%s299 + $0x70] sm:$0xff]
      %v370 = vld [vmem:[%s299 + $0x78] sm:$0xff]
      %371 = vmatprep.subr.mxu0 0.0
      %372 = vmatpush1.msra.mxu0 %v370
      %373 = vmatprep.subr.mxu0 0.0
      %374 = vmatpush1.msra.mxu0 %v369
      %375 = vmatprep.subr.mxu0 0.0
      %376 = vmatpush1.msra.mxu0 %v368
      %377 = vmatprep.subr.mxu0 0.0
      %378 = vmatpush1.msra.mxu0 %v367
      %379 = vmatprep.subr.mxu0 0.0
      %380 = vmatpush1.msra.mxu0 %v366
      %381 = vmatprep.subr.mxu0 0.0
      %382 = vmatpush1.msra.mxu0 %v365
      %383 = vmatprep.subr.mxu0 0.0
      %384 = vmatpush1.msra.mxu0 %v364
      %385 = vmatprep.subr.mxu0 0.0
      %386 = vmatpush1.msra.mxu0 %v363
      %387 = vmatprep.subr.mxu0 0.0
      %388 = vmatpush1.msra.mxu0 %v362
      %389 = vmatprep.subr.mxu0 0.0
      %390 = vmatpush1.msra.mxu0 %v361
      %391 = vmatprep.subr.mxu0 0.0
      %392 = vmatpush1.msra.mxu0 %v360
      %393 = vmatprep.subr.mxu0 0.0
      %394 = vmatpush1.msra.mxu0 %v359
      %395 = vmatprep.subr.mxu0 0.0
      %396 = vmatpush1.msra.mxu0 %v358
      %397 = vmatprep.subr.mxu0 0.0
      %398 = vmatpush1.msra.mxu0 %v357
      %399 = vmatprep.subr.mxu0 0.0
      %400 = vmatpush1.msra.mxu0 %v356
      %401 = vmatprep.subr.mxu0 0.0
      %402 = vmatpush1.msra.mxu0 %v355
      %403 = vmatprep.subr.mxu0 0.0
      %404 = vmatpush2.msra.mxu0 0.0
      %405 = vmatprep.subr.mxu0 0.0
      %406 = vmatpush2.msra.mxu0 0.0
      %407 = vmatprep.subr.mxu0 0.0
      %408 = vmatpush2.msra.mxu0 0.0
      %409 = vmatprep.subr.mxu0 0.0
      %410 = vmatpush2.msra.mxu0 0.0
      %411 = vmatprep.subr.mxu0 0.0
      %412 = vmatpush2.msra.mxu0 0.0
      %413 = vmatprep.subr.mxu0 0.0
      %414 = vmatpush2.msra.mxu0 0.0
      %415 = vmatprep.subr.mxu0 0.0
      %416 = vmatpush2.msra.mxu0 0.0
      %417 = vmatprep.subr.mxu0 0.0
      %418 = vmatpush2.msra.mxu0 0.0
      %419 = vmatprep.subr.mxu0 0.0
      %420 = vmatpush2.msra.mxu0 0.0
      %421 = vmatprep.subr.mxu0 0.0
      %422 = vmatpush2.msra.mxu0 0.0
      %423 = vmatprep.subr.mxu0 0.0
      %424 = vmatpush2.msra.mxu0 0.0
      %425 = vmatprep.subr.mxu0 0.0
      %426 = vmatpush2.msra.mxu0 0.0
      %427 = vmatprep.subr.mxu0 0.0
      %428 = vmatpush2.msra.mxu0 0.0
      %429 = vmatprep.subr.mxu0 0.0
      %430 = vmatpush2.msra.mxu0 0.0
      %431 = vmatprep.subr.mxu0 0.0
      %432 = vmatpush2.msra.mxu0 0.0
      %433 = vmatprep.subr.mxu0 0.0
      %434 = vmatpush2.msra.mxu0 0.0
      %435 = vmatprep.mubr.f32.mxu0 0.0
      %436 = vmatmul.mubr.f32.gmra.mxu0 %v339
      %v437 = vpop.f32.mrf.mxu0
      %v438 = vadd.f32 0.0, %v437
      %v439 = vpop.f32.mrf.mxu0
      %440 = vmatprep.mubr.f32.mxu0 0.0
      %441 = vmatmul.mubr.f32.gmra.mxu0 %v340
      %v442 = vpop.f32.mrf.mxu0
      %v443 = vadd.f32 0.0, %v442
      %v444 = vpop.f32.mrf.mxu0
      %445 = vmatprep.mubr.f32.mxu0 0.0
      %446 = vmatmul.mubr.f32.gmra.mxu0 %v341
      %v447 = vpop.f32.mrf.mxu0
      %v448 = vadd.f32 0.0, %v447
      %v449 = vpop.f32.mrf.mxu0
      %450 = vmatprep.mubr.f32.mxu0 0.0
      %451 = vmatmul.mubr.f32.gmra.mxu0 %v342
      %v452 = vpop.f32.mrf.mxu0
      %v453 = vadd.f32 0.0, %v452
      %v454 = vpop.f32.mrf.mxu0
      %455 = vmatprep.mubr.f32.mxu0 0.0
      %456 = vmatmul.mubr.f32.gmra.mxu0 %v343
      %v457 = vpop.f32.mrf.mxu0
      %v458 = vadd.f32 0.0, %v457
      %v459 = vpop.f32.mrf.mxu0
      %460 = vmatprep.mubr.f32.mxu0 0.0
      %461 = vmatmul.mubr.f32.gmra.mxu0 %v344
      %v462 = vpop.f32.mrf.mxu0
      %v463 = vadd.f32 0.0, %v462
      %v464 = vpop.f32.mrf.mxu0
      %465 = vmatprep.mubr.f32.mxu0 0.0
      %466 = vmatmul.mubr.f32.gmra.mxu0 %v345
      %v467 = vpop.f32.mrf.mxu0
      %v468 = vadd.f32 0.0, %v467
      %v469 = vpop.f32.mrf.mxu0
      %470 = vmatprep.mubr.f32.mxu0 0.0
      %471 = vmatmul.mubr.f32.gmra.mxu0 %v346
      %v472 = vpop.f32.mrf.mxu0
      %v473 = vadd.f32 0.0, %v472
      %v474 = vpop.f32.mrf.mxu0
      %475 = vmatprep.mubr.f32.mxu0 0.0
      %476 = vmatmul.mubr.f32.gmra.mxu0 %v347
      %v477 = vpop.f32.mrf.mxu0
      %v478 = vadd.f32 0.0, %v477
      %v479 = vpop.f32.mrf.mxu0
      %480 = vmatprep.mubr.f32.mxu0 0.0
      %481 = vmatmul.mubr.f32.gmra.mxu0 %v348
      %v482 = vpop.f32.mrf.mxu0
      %v483 = vadd.f32 0.0, %v482
      %v484 = vpop.f32.mrf.mxu0
      %485 = vmatprep.mubr.f32.mxu0 0.0
      %486 = vmatmul.mubr.f32.gmra.mxu0 %v349
      %v487 = vpop.f32.mrf.mxu0
      %v488 = vadd.f32 0.0, %v487
      %v489 = vpop.f32.mrf.mxu0
      %490 = vmatprep.mubr.f32.mxu0 0.0
      %491 = vmatmul.mubr.f32.gmra.mxu0 %v350
      %v492 = vpop.f32.mrf.mxu0
      %v493 = vadd.f32 0.0, %v492
      %v494 = vpop.f32.mrf.mxu0
      %495 = vmatprep.mubr.f32.mxu0 0.0
      %496 = vmatmul.mubr.f32.gmra.mxu0 %v351
      %v497 = vpop.f32.mrf.mxu0
      %v498 = vadd.f32 0.0, %v497
      %v499 = vpop.f32.mrf.mxu0
      %500 = vmatprep.mubr.f32.mxu0 0.0
      %501 = vmatmul.mubr.f32.gmra.mxu0 %v352
      %v502 = vpop.f32.mrf.mxu0
      %v503 = vadd.f32 0.0, %v502
      %v504 = vpop.f32.mrf.mxu0
      %505 = vmatprep.mubr.f32.mxu0 0.0
      %506 = vmatmul.mubr.f32.gmra.mxu0 %v353
      %v507 = vpop.f32.mrf.mxu0
      %v508 = vadd.f32 0.0, %v507
      %v509 = vpop.f32.mrf.mxu0
      %510 = vmatprep.mubr.f32.mxu0 0.0
      %511 = vmatmul.mubr.f32.gmra.mxu0 %v354
      %v512 = vpop.f32.mrf.mxu0
      %v513 = vadd.f32 0.0, %v512
      %v514 = vpop.f32.mrf.mxu0
      %515 = vdwg.mxu0
      %v516 = vld [vmem:[%s315] sm:$0xff]
      %v517 = vld [vmem:[%s315 + $0x8] sm:$0xff]
      %v518 = vld [vmem:[%s315 + $0x10] sm:$0xff]
      %v519 = vld [vmem:[%s315 + $0x18] sm:$0xff]
      %v520 = vld [vmem:[%s315 + $0x20] sm:$0xff]
      %v521 = vld [vmem:[%s315 + $0x28] sm:$0xff]
      %v522 = vld [vmem:[%s315 + $0x30] sm:$0xff]
      %v523 = vld [vmem:[%s315 + $0x38] sm:$0xff]
      %v524 = vld [vmem:[%s315 + $0x40] sm:$0xff]
      %v525 = vld [vmem:[%s315 + $0x48] sm:$0xff]
      %v526 = vld [vmem:[%s315 + $0x50] sm:$0xff]
      %v527 = vld [vmem:[%s315 + $0x58] sm:$0xff]
      %v528 = vld [vmem:[%s315 + $0x60] sm:$0xff]
      %v529 = vld [vmem:[%s315 + $0x68] sm:$0xff]
      %v530 = vld [vmem:[%s315 + $0x70] sm:$0xff]
      %v531 = vld [vmem:[%s315 + $0x78] sm:$0xff]
      %v532 = vld [vmem:[%s309] sm:$0xff]
      %v533 = vld [vmem:[%s309 + $0x8] sm:$0xff]
      %v534 = vld [vmem:[%s309 + $0x10] sm:$0xff]
      %v535 = vld [vmem:[%s309 + $0x18] sm:$0xff]
      %v536 = vld [vmem:[%s309 + $0x20] sm:$0xff]
      %v537 = vld [vmem:[%s309 + $0x28] sm:$0xff]
      %v538 = vld [vmem:[%s309 + $0x30] sm:$0xff]
      %v539 = vld [vmem:[%s309 + $0x38] sm:$0xff]
      %v540 = vld [vmem:[%s309 + $0x40] sm:$0xff]
      %v541 = vld [vmem:[%s309 + $0x48] sm:$0xff]
      %v542 = vld [vmem:[%s309 + $0x50] sm:$0xff]
      %v543 = vld [vmem:[%s309 + $0x58] sm:$0xff]
      %v544 = vld [vmem:[%s309 + $0x60] sm:$0xff]
      %v545 = vld [vmem:[%s309 + $0x68] sm:$0xff]
      %v546 = vld [vmem:[%s309 + $0x70] sm:$0xff]
      %v547 = vld [vmem:[%s309 + $0x78] sm:$0xff]
      %549 = vset.pattern.permute.xlu0 0
      %550 = vperm.xlu0 %549, %v532
      %v551 = vpop.permute.xlu0 %550
      %554 = vset.pattern.permute.xlu0 0
      %555 = vperm.xlu0 %554, %v533
      %v556 = vpop.permute.xlu0 %555
      %559 = vset.pattern.permute.xlu0 0
      %560 = vperm.xlu0 %559, %v534
      %v561 = vpop.permute.xlu0 %560
      %564 = vset.pattern.permute.xlu0 0
      %565 = vperm.xlu0 %564, %v535
      %v566 = vpop.permute.xlu0 %565
      %569 = vset.pattern.permute.xlu0 0
      %570 = vperm.xlu0 %569, %v536
      %v571 = vpop.permute.xlu0 %570
      %574 = vset.pattern.permute.xlu0 0
      %575 = vperm.xlu0 %574, %v537
      %v576 = vpop.permute.xlu0 %575
      %579 = vset.pattern.permute.xlu0 0
      %580 = vperm.xlu0 %579, %v538
      %v581 = vpop.permute.xlu0 %580
      %584 = vset.pattern.permute.xlu0 0
      %585 = vperm.xlu0 %584, %v539
      %v586 = vpop.permute.xlu0 %585
      %589 = vset.pattern.permute.xlu0 0
      %590 = vperm.xlu0 %589, %v540
      %v591 = vpop.permute.xlu0 %590
      %594 = vset.pattern.permute.xlu0 0
      %595 = vperm.xlu0 %594, %v541
      %v596 = vpop.permute.xlu0 %595
      %599 = vset.pattern.permute.xlu0 0
      %600 = vperm.xlu0 %599, %v542
      %v601 = vpop.permute.xlu0 %600
      %604 = vset.pattern.permute.xlu0 0
      %605 = vperm.xlu0 %604, %v543
      %v606 = vpop.permute.xlu0 %605
      %609 = vset.pattern.permute.xlu0 0
      %610 = vperm.xlu0 %609, %v544
      %v611 = vpop.permute.xlu0 %610
      %614 = vset.pattern.permute.xlu0 0
      %615 = vperm.xlu0 %614, %v545
      %v616 = vpop.permute.xlu0 %615
      %619 = vset.pattern.permute.xlu0 0
      %620 = vperm.xlu0 %619, %v546
      %v621 = vpop.permute.xlu0 %620
      %624 = vset.pattern.permute.xlu0 0
      %625 = vperm.xlu0 %624, %v547
      %v626 = vpop.permute.xlu0 %625
      %v628 = vmul.f32 %v551, %v438
      %v629 = vmul.f32 %v556, %v443
      %v630 = vmul.f32 %v561, %v448
      %v631 = vmul.f32 %v566, %v453
      %v632 = vmul.f32 %v571, %v458
      %v633 = vmul.f32 %v576, %v463
      %v634 = vmul.f32 %v581, %v468
      %v635 = vmul.f32 %v586, %v473
      %v636 = vmul.f32 %v591, %v478
      %v637 = vmul.f32 %v596, %v483
      %v638 = vmul.f32 %v601, %v488
      %v639 = vmul.f32 %v606, %v493
      %v640 = vmul.f32 %v611, %v498
      %v641 = vmul.f32 %v616, %v503
      %v642 = vmul.f32 %v621, %v508
      %v643 = vmul.f32 %v626, %v513
      %v644 = vadd.f32 %v516, %v628
      %v645 = vadd.f32 %v517, %v629
      %v646 = vadd.f32 %v518, %v630
      %v647 = vadd.f32 %v519, %v631
      %v648 = vadd.f32 %v520, %v632
      %v649 = vadd.f32 %v521, %v633
      %v650 = vadd.f32 %v522, %v634
      %v651 = vadd.f32 %v523, %v635
      %v652 = vadd.f32 %v524, %v636
      %v653 = vadd.f32 %v525, %v637
      %v654 = vadd.f32 %v526, %v638
      %v655 = vadd.f32 %v527, %v639
      %v656 = vadd.f32 %v528, %v640
      %v657 = vadd.f32 %v529, %v641
      %v658 = vadd.f32 %v530, %v642
      %v659 = vadd.f32 %v531, %v643
      %660 = vst [vmem:[%s315] sm:$0xff] %v644
      %661 = vst [vmem:[%s315 + $0x8] sm:$0xff] %v645
      %662 = vst [vmem:[%s315 + $0x10] sm:$0xff] %v646
      %663 = vst [vmem:[%s315 + $0x18] sm:$0xff] %v647
      %664 = vst [vmem:[%s315 + $0x20] sm:$0xff] %v648
      %665 = vst [vmem:[%s315 + $0x28] sm:$0xff] %v649
      %666 = vst [vmem:[%s315 + $0x30] sm:$0xff] %v650
      %667 = vst [vmem:[%s315 + $0x38] sm:$0xff] %v651
      %668 = vst [vmem:[%s315 + $0x40] sm:$0xff] %v652
      %669 = vst [vmem:[%s315 + $0x48] sm:$0xff] %v653
      %670 = vst [vmem:[%s315 + $0x50] sm:$0xff] %v654
      %671 = vst [vmem:[%s315 + $0x58] sm:$0xff] %v655
      %672 = vst [vmem:[%s315 + $0x60] sm:$0xff] %v656
      %673 = vst [vmem:[%s315 + $0x68] sm:$0xff] %v657
      %674 = vst [vmem:[%s315 + $0x70] sm:$0xff] %v658
      %675 = vst [vmem:[%s315 + $0x78] sm:$0xff] %v659
      %p676 = scmp.eq.s32.totalorder %s21, 2
      %p677 = pnand %p676, %p318
      %p678 = pneg %p677
      // Predicated region
      $region41: #{rel_graph_conv_layer.3} parent=35 // pred_check
        _
      $region42: #{rel_graph_conv_layer.3} parent=35 // pred_check_branch
        %680 = sbr.rel (%p677) target = $region44
      $region43: #{rel_graph_conv_layer.3} parent=35 // pred_region
        %v681 = vld [vmem:[%s315] sm:$0xff]
        %v682 = vld [vmem:[%s315 + $0x8] sm:$0xff]
        %v683 = vld [vmem:[%s315 + $0x10] sm:$0xff]
        %v684 = vld [vmem:[%s315 + $0x18] sm:$0xff]
        %v685 = vld [vmem:[%s315 + $0x20] sm:$0xff]
        %v686 = vld [vmem:[%s315 + $0x28] sm:$0xff]
        %v687 = vld [vmem:[%s315 + $0x30] sm:$0xff]
        %v688 = vld [vmem:[%s315 + $0x38] sm:$0xff]
        %v689 = vld [vmem:[%s315 + $0x40] sm:$0xff]
        %v690 = vld [vmem:[%s315 + $0x48] sm:$0xff]
        %v691 = vld [vmem:[%s315 + $0x50] sm:$0xff]
        %v692 = vld [vmem:[%s315 + $0x58] sm:$0xff]
        %v693 = vld [vmem:[%s315 + $0x60] sm:$0xff]
        %v694 = vld [vmem:[%s315 + $0x68] sm:$0xff]
        %v695 = vld [vmem:[%s315 + $0x70] sm:$0xff]
        %v696 = vld [vmem:[%s315 + $0x78] sm:$0xff]
        %v697 = vld [vmem:[%s3] sm:$0x1]
        %v699 = vlaneseq
        %v700 = vshrl.u32 %v699, 7
        %v701 = vsub.s32 0, %v700
        %v702 = vrot.slane %v697, %v701
        %v704 = vadd.f32 %v681, %v702
        %v705 = vadd.f32 %v682, %v702
        %v706 = vadd.f32 %v683, %v702
        %v707 = vadd.f32 %v684, %v702
        %v708 = vadd.f32 %v685, %v702
        %v709 = vadd.f32 %v686, %v702
        %v710 = vadd.f32 %v687, %v702
        %v711 = vadd.f32 %v688, %v702
        %v712 = vadd.f32 %v689, %v702
        %v713 = vadd.f32 %v690, %v702
        %v714 = vadd.f32 %v691, %v702
        %v715 = vadd.f32 %v692, %v702
        %v716 = vadd.f32 %v693, %v702
        %v717 = vadd.f32 %v694, %v702
        %v718 = vadd.f32 %v695, %v702
        %v719 = vadd.f32 %v696, %v702
        %v720 = vmax.f32 %v704, 0.0
        %v721 = vmax.f32 %v705, 0.0
        %v722 = vmax.f32 %v706, 0.0
        %v723 = vmax.f32 %v707, 0.0
        %v724 = vmax.f32 %v708, 0.0
        %v725 = vmax.f32 %v709, 0.0
        %v726 = vmax.f32 %v710, 0.0
        %v727 = vmax.f32 %v711, 0.0
        %v728 = vmax.f32 %v712, 0.0
        %v729 = vmax.f32 %v713, 0.0
        %v730 = vmax.f32 %v714, 0.0
        %v731 = vmax.f32 %v715, 0.0
        %v732 = vmax.f32 %v716, 0.0
        %v733 = vmax.f32 %v717, 0.0
        %v734 = vmax.f32 %v718, 0.0
        %v735 = vmax.f32 %v719, 0.0
        %736 = vst [vmem:[%s315] sm:$0xff] %v720
        %737 = vst [vmem:[%s315 + $0x8] sm:$0xff] %v721
        %738 = vst [vmem:[%s315 + $0x10] sm:$0xff] %v722
        %739 = vst [vmem:[%s315 + $0x18] sm:$0xff] %v723
        %740 = vst [vmem:[%s315 + $0x20] sm:$0xff] %v724
        %741 = vst [vmem:[%s315 + $0x28] sm:$0xff] %v725
        %742 = vst [vmem:[%s315 + $0x30] sm:$0xff] %v726
        %743 = vst [vmem:[%s315 + $0x38] sm:$0xff] %v727
        %744 = vst [vmem:[%s315 + $0x40] sm:$0xff] %v728
        %745 = vst [vmem:[%s315 + $0x48] sm:$0xff] %v729
        %746 = vst [vmem:[%s315 + $0x50] sm:$0xff] %v730
        %747 = vst [vmem:[%s315 + $0x58] sm:$0xff] %v731
        %748 = vst [vmem:[%s315 + $0x60] sm:$0xff] %v732
        %749 = vst [vmem:[%s315 + $0x68] sm:$0xff] %v733
        %750 = vst [vmem:[%s315 + $0x70] sm:$0xff] %v734
        %751 = vst [vmem:[%s315 + $0x78] sm:$0xff] %v735
      $region44: #{rel_graph_conv_layer.3} parent=35 // pred_fallthru
        _
      %s752 = smul.u32 16, %s20
      %p753 = scmp.lt.s32.totalorder %s752, 15
      %s754 = scalar_select %p753, %s752, 15
      %s755 = smul.addr %s754, 8
      %s756 = scalar_lea.vmem %s4, %s755
      // Predicated region
      $region45: #{rel_graph_conv_layer.3} parent=35 // pred_check
        %p757 = pneg %p159
      $region46: #{rel_graph_conv_layer.3} parent=35 // pred_check_branch
        %759 = sbr.rel (%p757) target = $region48
      $region47: #{rel_graph_conv_layer.3} parent=35 // pred_region
        %s760 = smul.u32 16, %s20
      $region48: #{rel_graph_conv_layer.3} parent=35 // pred_fallthru
        _
      // Predicated region
      $region49: #{rel_graph_conv_layer.3} parent=35 // pred_check
        %p761 = pneg %p159
      $region50: #{rel_graph_conv_layer.3} parent=35 // pred_check_branch
        %763 = sbr.rel (%p761) target = $region52
      $region51: #{rel_graph_conv_layer.3} parent=35 // pred_region
        %s764 = smul.u32 16, %s20
        %p765 = scmp.lt.s32.totalorder %s764, 15
        %s766 = scalar_select %p765, %s764, 15
        %s767 = smul.addr %s766, 8
        %s768 = scalar_lea.vmem %s4, %s767
      $region52: #{rel_graph_conv_layer.3} parent=35 // pred_fallthru
        _
    $region36: #{rel_graph_conv_layer.3} parent=5 // pred_fallthru
      _
    %p769 = scmp.le.s32.totalorder 2, %s10
    // Predicated region
    $region53: #{rel_graph_conv_layer.3} parent=5 // pred_check
      %p770 = pneg %p769
    $region54: #{rel_graph_conv_layer.3} parent=5 // pred_check_branch
      %772 = sbr.rel (%p770) target = $region56
    $region55: #{rel_graph_conv_layer.3} parent=5 // pred_region
      %s773 = ssub.s32 %s10, 2
    $region56: #{rel_graph_conv_layer.3} parent=5 // pred_fallthru
      _
  $region6: #{rel_graph_conv_layer.3} parent=0 // loop_footer
    %s14 = sadd.s32 1, %s10
  $region7: #{rel_graph_conv_layer.3} parent=0 // loop_footer_branch
    %9 = sbr.rel target = $region3
  $region8: #{rel_graph_conv_layer.3} parent=0 // loop_exit
    _

</llo_original>
